<compile_context>
chip_gen: v6e
topology: v6e:2x2x1
jax: 0.10.0
libtpu: 0.0.40
codegen_flags: <defaults>
</compile_context>

<pallas_src>
import math
import functools

import jax
import jax.numpy as jnp
from jax import lax
from jax.experimental import pallas as pl
from jax.experimental.pallas import tpu as pltpu


def _round_down(x, m):
    return max(m, (x // m) * m)


def _tgt_embed_kernel(ids_ref, emb_ref, pos_ref, out_ref, *, scale):
    """One grid step = one (tile_s, E) slab of one sequence.

    ids_ref : (tile_s, 1) int32 token ids for this tile (VMEM block)
    emb_ref : (V, E) token embedding table, resident in VMEM
    pos_ref : (tile_s, E) positional rows for this tile (pipelined VMEM block)
    out_ref : (tile_s, E) output tile
    """
    tile_s = ids_ref.shape[0]
    vocab = emb_ref.shape[0]

    # Vectorized gather on the MXU: one_hot(ids) @ emb_table, f32 accumulate.
    iota_v = lax.broadcasted_iota(jnp.int32, (tile_s, vocab), 1)
    one_hot = (ids_ref[...] == iota_v).astype(emb_ref.dtype)
    rows = jnp.dot(one_hot, emb_ref[...], preferred_element_type=jnp.float32)

    out = rows * scale + pos_ref[...].astype(jnp.float32)
    out_ref[...] = out.astype(out_ref.dtype)
    # TODO(synk): nn.Dropout omitted — eval/inference semantics (identity).


def tgt_embedding(seq, emb_table, pos_table, *, embedding_mul=True, step=None):
    """seq: (B, S) int ids -> (B, S, E) embeddings (scaled + positional add)."""
    B, S = seq.shape
    V, E = emb_table.shape
    P, Ep = pos_table.shape
    assert Ep == E
    if step is None:
        assert S <= P, "sequence length exceeds positional table size"
    elif isinstance(step, int):
        assert 0 <= step < P, "step out of range of positional table"

    out_dtype = jnp.promote_types(emb_table.dtype, pos_table.dtype)
    out_itemsize = jnp.dtype(out_dtype).itemsize
    scale = math.sqrt(float(E)) if embedding_mul else 1.0

    # Positional rows per sequence position as a dense (S, E) slab so the
    # in-kernel positional add is a plain tiled vector add (no gather).
    if step is None:
        pos_slab = pos_table[:S]
    else:
        pos_slab = jnp.broadcast_to(pos_table[step], (S, E))

    # Token tile: sized from E and a ~2 MiB-per-buffer budget, multiple of 8
    # (128+ preferred so the one-hot matmul M dim fills the MXU), or the full
    # sequence when it fits (full-extent blocks are always layout-legal).
    cap = max(8, min(512, _round_down((2 << 20) // max(1, E * out_itemsize), 8)))
    tile_s = S if S <= cap else cap
    n_s = pl.cdiv(S, tile_s)

    ids = seq.astype(jnp.int32).reshape(B, S, 1)

    # VMEM accounting (default double-buffering on every block).
    emb_bytes = V * E * jnp.dtype(emb_table.dtype).itemsize
    pos_tile_bytes = tile_s * E * jnp.dtype(pos_table.dtype).itemsize
    out_tile_bytes = tile_s * E * out_itemsize
    ids_tile_bytes = tile_s * 4
    vmem_needed = 2 * (emb_bytes + pos_tile_bytes + out_tile_bytes + ids_tile_bytes)

    try:
        vmem_cap = int(pltpu.get_tpu_info().vmem_capacity_bytes)
    except Exception:
        vmem_cap = 64 << 20  # conservative (v7x per-TensorCore)
    if vmem_needed + (2 << 20) > vmem_cap:
        # TODO(synk): HBM DMA row-gather fallback (memory_space=pl.ANY +
        # make_async_copy ring) for vocab tables too large for VMEM residency.
        raise NotImplementedError("embedding table too large for VMEM residency")
    vmem_limit = int(min(max(vmem_needed + (4 << 20), 32 << 20),
                         vmem_cap - (8 << 20)))

    cost = pl.CostEstimate(
        flops=2 * B * S * V * E + 2 * B * S * E,
        transcendentals=0,
        bytes_accessed=int(emb_bytes
                           + S * E * jnp.dtype(pos_table.dtype).itemsize
                           + B * S * 4
                           + B * S * E * out_itemsize),
    )

    out = pl.pallas_call(
        functools.partial(_tgt_embed_kernel, scale=scale),
        out_shape=jax.ShapeDtypeStruct((B, S, E), out_dtype),
        grid=(B, n_s),
        in_specs=[
            pl.BlockSpec((None, tile_s, 1), lambda b, s: (b, s, 0)),  # token ids
            pl.BlockSpec((V, E), lambda b, s: (0, 0)),                # emb table (resident)
            pl.BlockSpec((tile_s, E), lambda b, s: (s, 0)),           # positional slab tile
        ],
        out_specs=pl.BlockSpec((None, tile_s, E), lambda b, s: (b, s, 0)),
        compiler_params=pltpu.CompilerParams(
            dimension_semantics=("parallel", "parallel"),
            vmem_limit_bytes=vmem_limit,
        ),
        cost_estimate=cost,
    )(ids, emb_table, pos_slab)

    return out


def _reference(seq, emb_table, pos_table, *, embedding_mul=True, step=None):
    E = emb_table.shape[1]
    c = emb_table[seq].astype(jnp.float32)          # (B, S, E)
    if embedding_mul:
        c = c * math.sqrt(float(E))
    if step is None:
        pos = jnp.arange(seq.shape[1])
        c = c + pos_table[pos][None, :, :].astype(jnp.float32)
    else:
        c = c + pos_table[step][None, None, :].astype(jnp.float32)
    return c


if __name__ == "__main__":
    # Small shapes consistent with the module's forward.
    B, S = 2, 8
    E = 128                     # args.embedding_size
    V = 50                      # len(vocab)
    MAX_TGT_LEN = 16            # args.max_target_len
    PAD_IDX = 0                 # vocab.pad_index
    EMBEDDING_MUL = True        # args.embedding_mul

    key = jax.random.PRNGKey(0)
    k_emb, k_pos, k_seq = jax.random.split(key, 3)

    # Deterministic synthetic parameters; padding row zeroed like
    # nn.Embedding(padding_idx=...).
    emb_table = jax.random.normal(k_emb, (V, E), dtype=jnp.float32) * 0.02
    emb_table = emb_table.at[PAD_IDX].set(0.0)
    pos_table = jax.random.normal(k_pos, (MAX_TGT_LEN + 2, E),
                                  dtype=jnp.float32) * 0.02

    seq = jax.random.randint(k_seq, (B, S), 0, V, dtype=jnp.int32)

    # Training-style forward (step=None).
    out = tgt_embedding(seq, emb_table, pos_table, embedding_mul=EMBEDDING_MUL)
    out = jax.block_until_ready(out)
    ref = _reference(seq, emb_table, pos_table, embedding_mul=EMBEDDING_MUL)
    assert out.shape == (B, S, E)
    assert jnp.allclose(out, ref, atol=1e-5, rtol=1e-5)

    # Decode-style forward (step != None) broadcasts a single positional row.
    out_step = tgt_embedding(seq[:, :1], emb_table, pos_table,
                             embedding_mul=EMBEDDING_MUL, step=3)
    out_step = jax.block_until_ready(out_step)
    ref_step = _reference(seq[:, :1], emb_table, pos_table,
                          embedding_mul=EMBEDDING_MUL, step=3)
    assert jnp.allclose(out_step, ref_step, atol=1e-5, rtol=1e-5)

    print("KERNEL_OK")
</pallas_src>

<mosaic_0001>
module attributes {stable_mosaic.version = 11 : i64} {
  func.func @_tgt_embed_kernel(%arg0: i32, %arg1: i32, %arg2: memref<1x8x1xi32, #tpu.memory_space<vmem>>, %arg3: memref<50x128xf32, #tpu.memory_space<vmem>>, %arg4: memref<8x128xf32, #tpu.memory_space<vmem>>, %arg5: memref<1x8x128xf32, #tpu.memory_space<vmem>>) attributes {dimension_semantics = [#tpu.dimension_semantics<parallel>, #tpu.dimension_semantics<parallel>], iteration_bounds = array<i64: 2, 1>, scalar_prefetch = 0 : i64, scratch_operands = 0 : i64, tpu.core_type = #tpu.core_type<tc>, window_params = [{transform_indices = @transform_0, window_bounds = array<i64: 1, 8, 1>}, {pipeline_mode = #tpu.pipeline_mode<synchronous>, transform_indices = @transform_1, window_bounds = array<i64: 50, 128>}, {transform_indices = @transform_2, window_bounds = array<i64: 8, 128>}, {transform_indices = @transform_3, window_bounds = array<i64: 1, 8, 128>}]} {
    %0 = tpu.iota {dimensions = array<i32: 1>} : vector<8x50xi32>
    %c0 = arith.constant 0 : index
    %c0_0 = arith.constant 0 : index
    %c0_1 = arith.constant 0 : index
    %1 = vector.load %arg2[%c0, %c0_0, %c0_1] : memref<1x8x1xi32, #tpu.memory_space<vmem>>, vector<1x8x1xi32>
    %2 = vector.shape_cast %1 : vector<1x8x1xi32> to vector<8x1xi32>
    %3 = vector.broadcast %2 : vector<8x1xi32> to vector<8x50xi32>
    %4 = arith.cmpi eq, %3, %0 : vector<8x50xi32>
    %5 = arith.extui %4 : vector<8x50xi1> to vector<8x50xi32>
    %6 = arith.sitofp %5 : vector<8x50xi32> to vector<8x50xf32>
    %c0_2 = arith.constant 0 : index
    %c0_3 = arith.constant 0 : index
    %7 = vector.load %arg3[%c0_2, %c0_3] : memref<50x128xf32, #tpu.memory_space<vmem>>, vector<50x128xf32>
    %cst = arith.constant dense<0.000000e+00> : vector<8x128xf32>
    %8 = tpu.matmul %6, %7, %cst {dimension_numbers = #tpu.dot_dimension_numbers<[1], [0], [0], [1], [0, 0, 1, 1], [], []>} : vector<8x50xf32>, vector<50x128xf32>, vector<8x128xf32> -> vector<8x128xf32>
    %cst_4 = arith.constant 11.3137083 : f32
    %9 = vector.broadcast %cst_4 : f32 to vector<8x128xf32>
    %10 = arith.mulf %8, %9 : vector<8x128xf32>
    %c0_5 = arith.constant 0 : index
    %c0_6 = arith.constant 0 : index
    %11 = vector.load %arg4[%c0_5, %c0_6] : memref<8x128xf32, #tpu.memory_space<vmem>>, vector<8x128xf32>
    %12 = arith.addf %10, %11 : vector<8x128xf32>
    %c0_7 = arith.constant 0 : index
    %c0_8 = arith.constant 0 : index
    %c0_9 = arith.constant 0 : index
    %13 = vector.load %arg5[%c0_7, %c0_8, %c0_9] : memref<1x8x128xf32, #tpu.memory_space<vmem>>, vector<1x8x128xf32>
    %14 = vector.shape_cast %13 : vector<1x8x128xf32> to vector<8x128xf32>
    %15 = vector.shape_cast %12 : vector<8x128xf32> to vector<1x8x128xf32>
    tpu.vector_store %arg5[%c0_7, %c0_8, %c0_9], %15 {strides = array<i32>} : memref<1x8x128xf32, #tpu.memory_space<vmem>>, vector<1x8x128xf32>,
    return
  }
  func.func @transform_0(%arg0: i32, %arg1: i32) -> (i32, i32, i32) {
    %c0_i32 = arith.constant 0 : i32
    %c0_i32_0 = arith.constant 0 : i32
    return %arg0, %arg1, %c0_i32 : i32, i32, i32
  }
  func.func @transform_1(%arg0: i32, %arg1: i32) -> (i32, i32) {
    %c0_i32 = arith.constant 0 : i32
    %c0_i32_0 = arith.constant 0 : i32
    %c0_i32_1 = arith.constant 0 : i32
    return %c0_i32, %c0_i32_0 : i32, i32
  }
  func.func @transform_2(%arg0: i32, %arg1: i32) -> (i32, i32) {
    %c0_i32 = arith.constant 0 : i32
    %c0_i32_0 = arith.constant 0 : i32
    return %arg1, %c0_i32 : i32, i32
  }
  func.func @transform_3(%arg0: i32, %arg1: i32) -> (i32, i32, i32) {
    %c0_i32 = arith.constant 0 : i32
    %c0_i32_0 = arith.constant 0 : i32
    return %arg0, %arg1, %c0_i32 : i32, i32, i32
  }
}

</mosaic_0001>

<llo_original>
// kernel: tpu_custom_call.1
$region0: #{tpu_custom_call.1}
  #allocation0 [shape = 'u32[]', space=smem, size = 0x4, offset = 0x4, fixed_abs, tag = 'smem constant byte address 0x4 - core index']
  #allocation1 [shape = 'u32[144,128]{1,0:T(1,128)}', space=vmem, size = 0x12000, scoped, tag = 'internal scratch']
  %s0 = inlined_call_operand.vmem [shape: s32[2,8,1], index: 0, kind: input, shape index: {}]
  %s1 = inlined_call_operand.hbm [shape: f32[50,128], index: 1, kind: input, shape index: {}]
  %s2 = inlined_call_operand.vmem [shape: f32[8,128], index: 2, kind: input, shape index: {}]
  %s3 = inlined_call_operand.hbm [shape: f32[2,8,128], index: 3, kind: output, shape index: {}]
  %s4 = sld [smem:[#allocation0]]
  $region49: #{tpu_custom_call.1} parent=0
    _
  %s6 = ssub.s32 1, %s4
  %s7 = scalar_select 0, %s6, %s4
  $region1: #{tpu_custom_call.1} parent=0
    #allocation2 [shape = 'u8[28672]{0}', space=vmem, size = 0x7000, scoped, tag = 'input window, operand 1, single buffered']
    #allocation3 [shape = 's32[2]{0}', space=sflag, size = 0x8, scoped, tag = 'scoped memory for tpu_custom_call.1']
    #allocation4 [shape = 's32[2]{0}', space=sflag, size = 0x8, scoped, tag = 'scoped memory for tpu_custom_call.1']
    #allocation5 [shape = 'u8[8192]{0}', space=vmem, size = 0x2000, scoped, tag = 'output window, operand 0']
    %8 = vsyncpa [#allocation3], 0
    %9 = vsyncpa [#allocation4], 0
    %s10 = scalar_lea.sflag [#allocation4], 1
    %11 = vsyncpa %s10, 0
    loop: start=0, step=1, limit=4
    $region2: #{tpu_custom_call.1} parent=1 // loop_pre_header
      _
    $region3: #{tpu_custom_call.1} parent=1 // loop_header
      %s13 = sphi 0, %s17
      %p14 = scmp.ge.s32.totalorder %s13, 4
      %s20 = sphi 0, %s32
      %s21 = sphi 0, %s28
      %s22 = sphi 0, %s20
      %s23 = sphi 0, %s21
      %s24 = sphi 0, %s22
      %s25 = sphi 0, %s23
      %s37 = sphi 0, %s39
      %s40 = sphi 0, %s37
      %s41 = sphi 0, %s40
      %s57 = sphi 0, %s41
      %s61 = sphi 0, %s61
      %s63 = sphi 0, %s61
      %s64 = sphi 0, %s63
      %s78 = sphi 0, %s64
      %s84 = sphi 0, %s86
      %s87 = sphi 0, %s84
      %s88 = sphi 0, %s87
      %s104 = sphi 0, %s88
      %s112 = sphi 0, %s114
      %s115 = sphi 0, %s112
      %s116 = sphi 0, %s115
      %s132 = sphi 0, %s116
    $region4: #{tpu_custom_call.1} parent=1 // loop_header_branch
      %16 = sbr.rel (%p14) target = $region8
    $region5: #{tpu_custom_call.1} parent=1 // loop_body
      %s18 = ssub.s32 %s13, 1
      %s19 = ssub.s32 %s13, 2
      %s26 = sadd.s32 1, %s21
      %p27 = scmp.ge.s32.totalorder %s26, 1
      %s28 = scalar_select %p27, 0, %s26
      %s29 = sadd.s32 1, %s20
      %s30 = scalar_select %p27, %s29, %s20
      %p31 = scmp.ge.s32.totalorder %s30, 2
      %s32 = scalar_select %p31, 0, %s30
      %s33 = ssub.s32 %s20, %s32
      %s34 = ssub.s32 %s21, %s28
      %s35 = sor.u32 %s33, %s34
      %p36 = scmp.eq.s32.totalorder %s35, 0
      %s38 = sadd.s32 %s37, 1
      %s39 = scalar_select %p36, %s37, %s38
      %p42 = pneg %p36
      %p43 = scmp.eq.s32.totalorder %s13, 1
      %p44 = por %p42, %p43
      %p45 = scmp.ne.s32.totalorder %s37, %s40
      %p46 = scmp.eq.s32.totalorder %s13, 0
      %p47 = por %p45, %p46
      %p48 = scmp.ne.s32.totalorder %s37, %s40
      %p49 = scmp.eq.s32.totalorder %s18, 1
      %p50 = por %p48, %p49
      %p51 = scmp.ne.s32.totalorder %s40, %s41
      %p52 = scmp.eq.s32.totalorder %s18, 0
      %p53 = por %p51, %p52
      %p54 = scmp.ne.s32.totalorder %s40, %s41
      %p55 = scmp.eq.s32.totalorder %s19, 1
      %p56 = por %p54, %p55
      %p58 = scmp.ne.s32.totalorder %s41, %s57
      %p59 = scmp.eq.s32.totalorder %s19, 0
      %p60 = por %p58, %p59
      %s62 = sadd.s32 %s61, 1
      %p65 = scmp.eq.s32.totalorder %s13, 1
      %p66 = scmp.ne.s32.totalorder %s61, %s63
      %p67 = scmp.eq.s32.totalorder %s13, 0
      %p68 = por %p66, %p67
      %p69 = scmp.ne.s32.totalorder %s61, %s63
      %p70 = scmp.eq.s32.totalorder %s18, 1
      %p71 = por %p69, %p70
      %p72 = scmp.ne.s32.totalorder %s63, %s64
      %p73 = scmp.eq.s32.totalorder %s18, 0
      %p74 = por %p72, %p73
      %p75 = scmp.ne.s32.totalorder %s63, %s64
      %p76 = scmp.eq.s32.totalorder %s19, 1
      %p77 = por %p75, %p76
      %p79 = scmp.ne.s32.totalorder %s64, %s78
      %p80 = scmp.eq.s32.totalorder %s19, 0
      %p81 = por %p79, %p80
      %s82 = ssub.s32 %s21, %s28
      %p83 = scmp.eq.s32.totalorder %s82, 0
      %s85 = sadd.s32 %s84, 1
      %s86 = scalar_select %p83, %s84, %s85
      %p89 = pneg %p83
      %p90 = scmp.eq.s32.totalorder %s13, 1
      %p91 = por %p89, %p90
      %p92 = scmp.ne.s32.totalorder %s84, %s87
      %p93 = scmp.eq.s32.totalorder %s13, 0
      %p94 = por %p92, %p93
      %p95 = scmp.ne.s32.totalorder %s84, %s87
      %p96 = scmp.eq.s32.totalorder %s18, 1
      %p97 = por %p95, %p96
      %p98 = scmp.ne.s32.totalorder %s87, %s88
      %p99 = scmp.eq.s32.totalorder %s18, 0
      %p100 = por %p98, %p99
      %p101 = scmp.ne.s32.totalorder %s87, %s88
      %p102 = scmp.eq.s32.totalorder %s19, 1
      %p103 = por %p101, %p102
      %p105 = scmp.ne.s32.totalorder %s88, %s104
      %p106 = scmp.eq.s32.totalorder %s19, 0
      %p107 = por %p105, %p106
      %s108 = ssub.s32 %s20, %s32
      %s109 = ssub.s32 %s21, %s28
      %s110 = sor.u32 %s108, %s109
      %p111 = scmp.eq.s32.totalorder %s110, 0
      %s113 = sadd.s32 %s112, 1
      %s114 = scalar_select %p111, %s112, %s113
      %p117 = pneg %p111
      %p118 = scmp.eq.s32.totalorder %s13, 1
      %p119 = por %p117, %p118
      %p120 = scmp.ne.s32.totalorder %s112, %s115
      %p121 = scmp.eq.s32.totalorder %s13, 0
      %p122 = por %p120, %p121
      %p123 = scmp.ne.s32.totalorder %s112, %s115
      %p124 = scmp.eq.s32.totalorder %s18, 1
      %p125 = por %p123, %p124
      %p126 = scmp.ne.s32.totalorder %s115, %s116
      %p127 = scmp.eq.s32.totalorder %s18, 0
      %p128 = por %p126, %p127
      %p129 = scmp.ne.s32.totalorder %s115, %s116
      %p130 = scmp.eq.s32.totalorder %s19, 1
      %p131 = por %p129, %p130
      %p133 = scmp.ne.s32.totalorder %s116, %s132
      %p134 = scmp.eq.s32.totalorder %s19, 0
      %p135 = por %p133, %p134
      %p136 = scmp.le.s32.totalorder 1, %s13
      %p137 = scmp.lt.s32.totalorder %s13, 3
      %p138 = pnand %p136, %p137
      %p139 = pneg %p138
      // Predicated region
      $region9: #{tpu_custom_call.1} parent=5 // pred_check
        _
      $region10: #{tpu_custom_call.1} parent=5 // pred_check_branch
        %141 = sbr.rel (%p138) target = $region12
      $region11: #{tpu_custom_call.1} parent=5 // pred_region
        %s142 = ssub.s32 %s13, 1
        // Predicated region
        $region13: #{tpu_custom_call.1} parent=11 // pred_check
          %p143 = pneg %p74
        $region14: #{tpu_custom_call.1} parent=11 // pred_check_branch
          %145 = sbr.rel (%p143) target = $region16
        $region15: #{tpu_custom_call.1} parent=11 // pred_region
          %s147 = ssub.s32 896, 896
          %148 = vsyncadd [#allocation3], %s147
          %s149 = sshll.u32 [#allocation2], 4
          %s150 = int_to_ptr.vmem [resolvable:$true] %s149
          %155 = dma.hbm_to_vmem [thread:$0]  %s1, 896, %s150, [#allocation3], 128, 128, 8
        $region16: #{tpu_custom_call.1} parent=11 // pred_fallthru
          _
        // Predicated region
        $region17: #{tpu_custom_call.1} parent=11 // pred_check
          %p156 = pneg %p100
        $region18: #{tpu_custom_call.1} parent=11 // pred_check_branch
          %158 = sbr.rel (%p156) target = $region20
        $region19: #{tpu_custom_call.1} parent=11 // pred_region
          %p159 = scmp.lt.s32.totalorder %s23, 0
          %s160 = scalar_select %p159, %s23, 0
          %s161 = smul.addr %s160, 8
          %s162 = scalar_lea.vmem %s2, %s161
        $region20: #{tpu_custom_call.1} parent=11 // pred_fallthru
          _
      $region12: #{tpu_custom_call.1} parent=5 // pred_fallthru
        _
      %p163 = scmp.lt.s32.totalorder %s13, 2
      // Predicated region
      $region21: #{tpu_custom_call.1} parent=5 // pred_check
        %p164 = pneg %p163
      $region22: #{tpu_custom_call.1} parent=5 // pred_check_branch
        %166 = sbr.rel (%p164) target = $region24
      $region23: #{tpu_custom_call.1} parent=5 // pred_region
        // Predicated region
        $region25: #{tpu_custom_call.1} parent=23 // pred_check
          %p167 = pneg %p47
        $region26: #{tpu_custom_call.1} parent=23 // pred_check_branch
          %169 = sbr.rel (%p167) target = $region28
        $region27: #{tpu_custom_call.1} parent=23 // pred_region
          %p170 = scmp.lt.s32.totalorder %s20, 1
          %s171 = scalar_select %p170, %s20, 1
          %p172 = scmp.lt.s32.totalorder %s21, 0
          %s173 = scalar_select %p172, %s21, 0
          %s174 = sadd.s32 %s173, %s171
          %s175 = smul.addr %s174, 8
          %s176 = scalar_lea.vmem %s0, %s175
        $region28: #{tpu_custom_call.1} parent=23 // pred_fallthru
          _
      $region24: #{tpu_custom_call.1} parent=5 // pred_fallthru
        _
      %p177 = scmp.le.s32.totalorder 1, %s13
      %p178 = scmp.lt.s32.totalorder %s13, 3
      %p179 = pnand %p177, %p178
      %p180 = pneg %p179
      // Predicated region
      $region29: #{tpu_custom_call.1} parent=5 // pred_check
        _
      $region30: #{tpu_custom_call.1} parent=5 // pred_check_branch
        %182 = sbr.rel (%p179) target = $region32
      $region31: #{tpu_custom_call.1} parent=5 // pred_region
        %s183 = ssub.s32 %s13, 1
        // Predicated region
        $region33: #{tpu_custom_call.1} parent=31 // pred_check
          %p184 = pneg %p74
        $region34: #{tpu_custom_call.1} parent=31 // pred_check_branch
          %186 = sbr.rel (%p184) target = $region36
        $region35: #{tpu_custom_call.1} parent=31 // pred_region
          %187 = dma.done [#allocation3], 896
        $region36: #{tpu_custom_call.1} parent=31 // pred_fallthru
          _
        %p188 = scmp.lt.s32.totalorder %s22, 1
        %s189 = scalar_select %p188, %s22, 1
        %p190 = scmp.lt.s32.totalorder %s23, 0
        %s191 = scalar_select %p190, %s23, 0
        %s192 = sadd.s32 %s191, %s189
        %s193 = smul.addr %s192, 8
        %s194 = scalar_lea.vmem %s0, %s193
        %p195 = pneg %p53
        %p196 = pneg %p50
        %p197 = pneg %p74
        %p198 = pneg %p71
        %p199 = scmp.lt.s32.totalorder %s23, 0
        %s200 = scalar_select %p199, %s23, 0
        %s201 = smul.addr %s200, 8
        %s202 = scalar_lea.vmem %s2, %s201
        %p203 = pneg %p100
        %p204 = pneg %p97
        %p205 = pneg %p128
        %p206 = pneg %p125
        %s207 = sand.u32 %s115, 1
        %s208 = scalar_lea.sflag [#allocation4], %s207
        %s209 = sand.u32 %s115, 1
        %s210 = smul.addr %s209, 8
        %s211 = scalar_lea.vmem [#allocation5], %s210
        %p212 = scmp.lt.s32.totalorder %s22, 1
        %s213 = scalar_select %p212, %s22, 1
        %p214 = scmp.lt.s32.totalorder %s23, 0
        %s215 = scalar_select %p214, %s23, 0
        %s216 = sadd.s32 %s215, %s213
        %s217 = smul.addr %s216, 8
        %s218 = scalar_lea.vmem %s0, %s217
        %p219 = scmp.lt.s32.totalorder %s23, 0
        %s220 = scalar_select %p219, %s23, 0
        %s221 = smul.addr %s220, 8
        %s222 = scalar_lea.vmem %s2, %s221
        %v223 = vlaneseq
        %v224 = vand.u32 %v223, 127
        %v225 = vld [vmem:[%s218] sm:$0xff]
        %226 = vset.pattern.permute.xlu0 0
        %227 = vperm.xlu0 %226, %v225
        %v228 = vpop.permute.xlu0 %227
        %vm229 = vcmp.eq.s32.totalorder %v228, %v224
        %v230 = vsel %vm229, 1, 0
        %v231 = vcvt.s32.f32 %v230
        %v232 = vld [vmem:[#allocation2] sm:$0xff]
        %v233 = vld [vmem:[#allocation2 + $0x8] sm:$0xff]
        %v234 = vld [vmem:[#allocation2 + $0x10] sm:$0xff]
        %v235 = vld [vmem:[#allocation2 + $0x18] sm:$0xff]
        %v236 = vld [vmem:[#allocation2 + $0x20] sm:$0xff]
        %v237 = vld [vmem:[#allocation2 + $0x28] sm:$0xff]
        %v238 = vld [vmem:[#allocation2 + $0x30] sm:$0x3]
        %vm239 = vcmask 408576
        %v241 = vsel %vm239, %v231, 0
        %vm243 = vcmask 1041408
        %v245 = vsel %vm243, %v238, 0
        %247 = vmatprep.subr.mxu0 0.0
        %248 = vmatpush1.msra.mxu0 0.0
        %249 = vmatprep.subr.mxu0 0.0
        %250 = vmatpush1.msra.mxu0 0.0
        %251 = vmatprep.subr.mxu0 0.0
        %252 = vmatpush1.msra.mxu0 0.0
        %253 = vmatprep.subr.mxu0 0.0
        %254 = vmatpush1.msra.mxu0 0.0
        %255 = vmatprep.subr.mxu0 0.0
        %256 = vmatpush1.msra.mxu0 0.0
        %257 = vmatprep.subr.mxu0 0.0
        %258 = vmatpush1.msra.mxu0 0.0
        %259 = vmatprep.subr.mxu0 0.0
        %260 = vmatpush1.msra.mxu0 0.0
        %261 = vmatprep.subr.mxu0 0.0
        %262 = vmatpush1.msra.mxu0 0.0
        %263 = vmatprep.subr.mxu0 0.0
        %264 = vmatpush1.msra.mxu0 0.0
        %265 = vmatprep.subr.mxu0 0.0
        %266 = vmatpush1.msra.mxu0 %v245
        %267 = vmatprep.subr.mxu0 0.0
        %268 = vmatpush1.msra.mxu0 %v237
        %269 = vmatprep.subr.mxu0 0.0
        %270 = vmatpush1.msra.mxu0 %v236
        %271 = vmatprep.subr.mxu0 0.0
        %272 = vmatpush1.msra.mxu0 %v235
        %273 = vmatprep.subr.mxu0 0.0
        %274 = vmatpush1.msra.mxu0 %v234
        %275 = vmatprep.subr.mxu0 0.0
        %276 = vmatpush1.msra.mxu0 %v233
        %277 = vmatprep.subr.mxu0 0.0
        %278 = vmatpush1.msra.mxu0 %v232
        %279 = vmatprep.subr.mxu0 0.0
        %280 = vmatpush2.msra.mxu0 0.0
        %281 = vmatprep.subr.mxu0 0.0
        %282 = vmatpush2.msra.mxu0 0.0
        %283 = vmatprep.subr.mxu0 0.0
        %284 = vmatpush2.msra.mxu0 0.0
        %285 = vmatprep.subr.mxu0 0.0
        %286 = vmatpush2.msra.mxu0 0.0
        %287 = vmatprep.subr.mxu0 0.0
        %288 = vmatpush2.msra.mxu0 0.0
        %289 = vmatprep.subr.mxu0 0.0
        %290 = vmatpush2.msra.mxu0 0.0
        %291 = vmatprep.subr.mxu0 0.0
        %292 = vmatpush2.msra.mxu0 0.0
        %293 = vmatprep.subr.mxu0 0.0
        %294 = vmatpush2.msra.mxu0 0.0
        %295 = vmatprep.subr.mxu0 0.0
        %296 = vmatpush2.msra.mxu0 0.0
        %297 = vmatprep.subr.mxu0 0.0
        %298 = vmatpush2.msra.mxu0 0.0
        %299 = vmatprep.subr.mxu0 0.0
        %300 = vmatpush2.msra.mxu0 0.0
        %301 = vmatprep.subr.mxu0 0.0
        %302 = vmatpush2.msra.mxu0 0.0
        %303 = vmatprep.subr.mxu0 0.0
        %304 = vmatpush2.msra.mxu0 0.0
        %305 = vmatprep.subr.mxu0 0.0
        %306 = vmatpush2.msra.mxu0 0.0
        %307 = vmatprep.subr.mxu0 0.0
        %308 = vmatpush2.msra.mxu0 0.0
        %309 = vmatprep.subr.mxu0 0.0
        %310 = vmatpush2.msra.mxu0 0.0
        %311 = vmatprep.mubr.f32.mxu0 0.0
        %312 = vmatmul.mubr.f32.gmra.mxu0 %v241
        %v313 = vpop.f32.mrf.mxu0
        %v314 = vadd.f32 0.0, %v313
        %v315 = vpop.f32.mrf.mxu0
        %316 = vdwg.mxu0
        %v317 = vmul.f32 %v314, 11.313708
        %v318 = vld [vmem:[%s222] sm:$0xff]
        %v319 = vadd.f32 %v317, %v318
        %320 = vst [vmem:[%s211] sm:$0xff] %v319
        %s321 = sand.u32 %s115, 1
        %s322 = scalar_lea.sflag [#allocation4], %s321
        %s323 = sand.u32 %s115, 1
        %s324 = smul.addr %s323, 8
        %s325 = scalar_lea.vmem [#allocation5], %s324
        // Predicated region
        $region37: #{tpu_custom_call.1} parent=31 // pred_check
          %p326 = pneg %p125
        $region38: #{tpu_custom_call.1} parent=31 // pred_check_branch
          %328 = sbr.rel (%p326) target = $region40
        $region39: #{tpu_custom_call.1} parent=31 // pred_region
          %s330 = ssub.s32 128, 128
          %331 = vsyncadd %s322, %s330
          %s332 = sadd.s32 %s23, %s22
          %s333 = smul.addr %s332, 128
          %s334 = scalar_lea.hbm %s3, %s333
          %s336 = sshll.u32 %s325, 4
          %s337 = int_to_ptr.vmem [resolvable:$true] %s336
          %339 = dma.vmem_to_hbm [thread:$0]  %s337, 128, %s334, %s322
        $region40: #{tpu_custom_call.1} parent=31 // pred_fallthru
          _
      $region32: #{tpu_custom_call.1} parent=5 // pred_fallthru
        _
      %p340 = scmp.le.s32.totalorder 2, %s13
      // Predicated region
      $region41: #{tpu_custom_call.1} parent=5 // pred_check
        %p341 = pneg %p340
      $region42: #{tpu_custom_call.1} parent=5 // pred_check_branch
        %343 = sbr.rel (%p341) target = $region44
      $region43: #{tpu_custom_call.1} parent=5 // pred_region
        %s344 = ssub.s32 %s13, 2
        // Predicated region
        $region45: #{tpu_custom_call.1} parent=43 // pred_check
          %p345 = pneg %p131
        $region46: #{tpu_custom_call.1} parent=43 // pred_check_branch
          %347 = sbr.rel (%p345) target = $region48
        $region47: #{tpu_custom_call.1} parent=43 // pred_region
          %s348 = sand.u32 %s116, 1
          %s349 = scalar_lea.sflag [#allocation4], %s348
          %s350 = sand.u32 %s116, 1
          %s351 = smul.addr %s350, 8
          %s352 = scalar_lea.vmem [#allocation5], %s351
          %353 = dma.done %s349, 128
        $region48: #{tpu_custom_call.1} parent=43 // pred_fallthru
          _
      $region44: #{tpu_custom_call.1} parent=5 // pred_fallthru
        _
    $region6: #{tpu_custom_call.1} parent=1 // loop_footer
      %s17 = sadd.s32 1, %s13
    $region7: #{tpu_custom_call.1} parent=1 // loop_footer_branch
      %12 = sbr.rel target = $region3
    $region8: #{tpu_custom_call.1} parent=1 // loop_exit
      _
    %354 = vsyncpa [#allocation3], 1
    %s355 = scalar_lea.sflag [#allocation3], 1
    %356 = vsyncpa %s355, 1
    %357 = vsyncpa [#allocation4], 1
    %s358 = scalar_lea.sflag [#allocation4], 1
    %359 = vsyncpa %s358, 1

</llo_original>
